<compile_context>
chip_gen: v6e
topology: v6e:2x2x1
jax: 0.10.0
libtpu: 0.0.40
codegen_flags: <defaults>
</compile_context>

<pallas_src>
import functools

import jax
import jax.numpy as jnp
import numpy as np
from jax import lax
from jax.experimental import pallas as pl
from jax.experimental.pallas import tpu as pltpu


# ----------------------------------------------------------------------------
# Kernel: one (batch, time-tile) block per grid step.  All tensors are in
# (channels, time) layout so time is the lane axis.
# ----------------------------------------------------------------------------
def _noncausal_layer_kernel(xyf_ref,    # (cin, t_tile + 2*pad)   bf16  frame w/ halo
                            wv_ref,     # (2*dc, radix*cin)       bf16  stacked taps
                            bwv_ref,    # (2*dc, 1)               f32
                            wor_ref,    # (rc, dc)                bf16  W_o residual head
                            wos_ref,    # (sc, dc)                bf16  W_o skip head
                            bor_ref,    # (rc, 1)                 f32
                            bos_ref,    # (sc, 1)                 f32
                            res_ref,    # (rc, t_tile)            f32 out
                            skip_ref,   # (sc, t_tile)            f32 out
                            *, radix, dilation, dc, rc, pad, t_tile):
    # 1) dilated conv as a single wide-K matmul: stack the radix shifted
    #    (cin, t_tile) windows along the contraction dim.
    taps = [xyf_ref[:, k * dilation:k * dilation + t_tile] for k in range(radix)]
    xwin = jnp.concatenate(taps, axis=0)                     # (radix*cin, t_tile)
    acc = jnp.dot(wv_ref[...], xwin,
                  preferred_element_type=jnp.float32)        # (2*dc, t_tile) f32
    acc = acc + bwv_ref[...]

    # 2) gated activation (chunk(2) along channels == sublane split), f32.
    z = jnp.tanh(acc[:dc, :]) * jax.nn.sigmoid(acc[dc:, :])  # (dc, t_tile)
    z_b = z.astype(jnp.bfloat16)

    # 3) 1x1 conv split into residual / skip heads (no output lane slicing).
    res = jnp.dot(wor_ref[...], z_b,
                  preferred_element_type=jnp.float32) + bor_ref[...]
    skip = jnp.dot(wos_ref[...], z_b,
                   preferred_element_type=jnp.float32) + bos_ref[...]

    # 4) residual add: x for this tile == centre of the frame's first rc rows.
    x_tile = xyf_ref[:rc, pad:pad + t_tile].astype(jnp.float32)
    res_ref[...] = (res + x_tile).astype(res_ref.dtype)
    skip_ref[...] = skip.astype(skip_ref.dtype)


# ----------------------------------------------------------------------------
# Wrapper: PyTorch-convention NCW tensors in / out, torch Conv1d weight layout.
# ----------------------------------------------------------------------------
def noncausal_layer(x_ncw, y_ncw, wv_t, bwv, wo_t, bwo, *, dilation, radix,
                    t_tile=256, vmem_limit_bytes=32 * 1024 * 1024):
    """x_ncw: (B, rc, T), y_ncw: (B, ac, T).  wv_t: (2*dc, rc+ac, radix),
    wo_t: (rc+sc, dc, 1) in torch Conv1d layout.  Returns (residual, skip) NCW."""
    B, rc, T = x_ncw.shape
    ac = y_ncw.shape[1]
    cin = rc + ac
    two_dc = wv_t.shape[0]
    dc = two_dc // 2
    out_ch = wo_t.shape[0]
    sc = out_ch - rc

    assert dilation * (radix - 1) % 2 == 0, \
        "residual add requires 'same' conv length (dilation*(radix-1) even)"
    pad = dilation * (radix - 1) // 2

    assert t_tile % 128 == 0, "time tile must be lane-dense (multiple of 128)"
    nt = -(-T // t_tile)                    # ceil
    t_pad_total = nt * t_tile
    win = t_tile + 2 * pad

    # --- activations: stay NCW, cast streamed operands to bf16 ---------------
    xy = jnp.concatenate([x_ncw, y_ncw], axis=1).astype(jnp.bfloat16)   # (B,cin,T)
    xy_p = jnp.pad(xy, ((0, 0), (0, 0), (pad, pad + t_pad_total - T)))
    # Per-tile frames with conv halo (duplicates only 2*pad rows per tile).
    frames = jnp.stack([xy_p[:, :, t * t_tile:t * t_tile + win]
                        for t in range(nt)], axis=1)        # (B, nt, cin, win)

    # --- weights: stack radix taps along K, split W_o into heads -------------
    wv_stack = jnp.transpose(wv_t, (0, 2, 1)).reshape(
        two_dc, radix * cin).astype(jnp.bfloat16)            # (2dc, radix*cin)
    wor = wo_t[:rc, :, 0].astype(jnp.bfloat16)               # (rc, dc)
    wos = wo_t[rc:, :, 0].astype(jnp.bfloat16)               # (sc, dc)
    bwv2 = bwv.reshape(two_dc, 1).astype(jnp.float32)
    bor = bwo[:rc].reshape(rc, 1).astype(jnp.float32)
    bos = bwo[rc:].reshape(sc, 1).astype(jnp.float32)

    # --- VMEM budget (double-buffered streams + resident weights) ------------
    blk_bytes = cin * win * 2 + (rc + sc) * t_tile * 4
    w_bytes = (wv_stack.size + wor.size + wos.size) * 2 \
        + (bwv2.size + bor.size + bos.size) * 4
    assert 2 * blk_bytes + w_bytes < vmem_limit_bytes // 2, \
        "t_tile too large for the VMEM budget (v7x has 64 MiB physical)"

    flops = 2 * B * t_pad_total * (radix * cin * two_dc + dc * out_ch)
    cost = pl.CostEstimate(
        flops=flops,
        transcendentals=B * t_pad_total * two_dc,
        bytes_accessed=frames.size * 2 + B * (rc + sc) * t_pad_total * 4 + w_bytes)

    kernel = functools.partial(
        _noncausal_layer_kernel,
        radix=radix, dilation=dilation, dc=dc, rc=rc, pad=pad, t_tile=t_tile)

    res, skip = pl.pallas_call(
        kernel,
        out_shape=(
            jax.ShapeDtypeStruct((B, rc, t_pad_total), jnp.float32),
            jax.ShapeDtypeStruct((B, sc, t_pad_total), jnp.float32),
        ),
        grid_spec=pltpu.PrefetchScalarGridSpec(
            num_scalar_prefetch=0,
            grid=(B, nt),
            in_specs=[
                pl.BlockSpec((None, None, cin, win), lambda b, t: (b, t, 0, 0)),
                pl.BlockSpec((two_dc, radix * cin), lambda b, t: (0, 0)),
                pl.BlockSpec((two_dc, 1), lambda b, t: (0, 0)),
                pl.BlockSpec((rc, dc), lambda b, t: (0, 0)),
                pl.BlockSpec((sc, dc), lambda b, t: (0, 0)),
                pl.BlockSpec((rc, 1), lambda b, t: (0, 0)),
                pl.BlockSpec((sc, 1), lambda b, t: (0, 0)),
            ],
            out_specs=[
                pl.BlockSpec((None, rc, t_tile), lambda b, t: (b, 0, t)),
                pl.BlockSpec((None, sc, t_tile), lambda b, t: (b, 0, t)),
            ],
        ),
        compiler_params=pltpu.CompilerParams(
            dimension_semantics=("parallel", "parallel"),
            vmem_limit_bytes=vmem_limit_bytes),
        cost_estimate=cost,
    )(frames, wv_stack, bwv2, wor, wos, bor, bos)

    return res[:, :, :T], skip[:, :, :T]


# ----------------------------------------------------------------------------
# Pure-JAX f32 reference (mirrors torch.nn.Conv1d / the module's forward).
# ----------------------------------------------------------------------------
def reference_forward(x_ncw, y_ncw, wv_t, bwv, wo_t, bwo, *, dilation, radix, rc):
    pad = dilation * (radix - 1) // 2
    xy = jnp.concatenate([x_ncw, y_ncw], axis=1)
    conv = lax.conv_general_dilated(
        xy, wv_t, window_strides=(1,), padding=[(pad, pad)],
        rhs_dilation=(dilation,), dimension_numbers=("NCH", "OIH", "NCH"))
    conv = conv + bwv[None, :, None]
    zw, zf = jnp.split(conv, 2, axis=1)
    z = jnp.tanh(zw) * jax.nn.sigmoid(zf)
    out = lax.conv_general_dilated(
        z, wo_t, window_strides=(1,), padding=[(0, 0)],
        dimension_numbers=("NCH", "OIH", "NCH"))
    out = out + bwo[None, :, None]
    return out[:, :rc] + x_ncw, out[:, rc:]


if __name__ == "__main__":
    # Small configuration (non-last layer, bias=True); T tiled into 2 tiles.
    B = 2
    residual_channels = 32
    aux_channels = 16
    dilation_channels = 32
    skip_channels = 32
    radix = 3
    dilation = 2
    T = 512
    T_TILE = 256
    cin = residual_channels + aux_channels
    out_ch = residual_channels + skip_channels

    key = jax.random.PRNGKey(0)
    k_x, k_y, k_wv, k_bwv, k_wo, k_bwo = jax.random.split(key, 6)

    x = jax.random.normal(k_x, (B, residual_channels, T), jnp.float32)
    y = jax.random.normal(k_y, (B, aux_channels, T), jnp.float32)

    # Parameters in torch Conv1d layout (Cout, Cin, K).
    wv_t = 0.1 * jax.random.normal(
        k_wv, (2 * dilation_channels, cin, radix), jnp.float32)
    bwv = 0.1 * jax.random.normal(k_bwv, (2 * dilation_channels,), jnp.float32)
    wo_t = 0.1 * jax.random.normal(
        k_wo, (out_ch, dilation_channels, 1), jnp.float32)
    bwo = 0.1 * jax.random.normal(k_bwo, (out_ch,), jnp.float32)

    res, skip = noncausal_layer(
        x, y, wv_t, bwv, wo_t, bwo,
        dilation=dilation, radix=radix, t_tile=T_TILE)
    jax.block_until_ready((res, skip))

    res_ref, skip_ref = reference_forward(
        x, y, wv_t, bwv, wo_t, bwo,
        dilation=dilation, radix=radix, rc=residual_channels)

    # bf16 streamed operands with f32 accumulate -> loose-ish tolerance.
    np.testing.assert_allclose(np.asarray(res), np.asarray(res_ref),
                               rtol=2e-2, atol=2e-2)
    np.testing.assert_allclose(np.asarray(skip), np.asarray(skip_ref),
                               rtol=2e-2, atol=2e-2)

    print("KERNEL_OK")
</pallas_src>

<mosaic_0001>
module attributes {stable_mosaic.version = 11 : i64} {
  func.func @_noncausal_layer_kernel(%arg0: i32, %arg1: i32, %arg2: memref<1x1x48x260xbf16, #tpu.memory_space<vmem>>, %arg3: memref<64x144xbf16, #tpu.memory_space<vmem>>, %arg4: memref<64x1xf32, #tpu.memory_space<vmem>>, %arg5: memref<32x32xbf16, #tpu.memory_space<vmem>>, %arg6: memref<32x32xbf16, #tpu.memory_space<vmem>>, %arg7: memref<32x1xf32, #tpu.memory_space<vmem>>, %arg8: memref<32x1xf32, #tpu.memory_space<vmem>>, %arg9: memref<1x32x256xf32, #tpu.memory_space<vmem>>, %arg10: memref<1x32x256xf32, #tpu.memory_space<vmem>>) attributes {dimension_semantics = [#tpu.dimension_semantics<parallel>, #tpu.dimension_semantics<parallel>], iteration_bounds = array<i64: 2, 2>, scalar_prefetch = 0 : i64, scratch_operands = 0 : i64, tpu.core_type = #tpu.core_type<tc>, window_params = [{transform_indices = @transform_0, window_bounds = array<i64: 1, 1, 48, 260>}, {pipeline_mode = #tpu.pipeline_mode<synchronous>, transform_indices = @transform_1, window_bounds = array<i64: 64, 144>}, {pipeline_mode = #tpu.pipeline_mode<synchronous>, transform_indices = @transform_2, window_bounds = array<i64: 64, 1>}, {pipeline_mode = #tpu.pipeline_mode<synchronous>, transform_indices = @transform_3, window_bounds = array<i64: 32, 32>}, {pipeline_mode = #tpu.pipeline_mode<synchronous>, transform_indices = @transform_4, window_bounds = array<i64: 32, 32>}, {pipeline_mode = #tpu.pipeline_mode<synchronous>, transform_indices = @transform_5, window_bounds = array<i64: 32, 1>}, {pipeline_mode = #tpu.pipeline_mode<synchronous>, transform_indices = @transform_6, window_bounds = array<i64: 32, 1>}, {transform_indices = @transform_7, window_bounds = array<i64: 1, 32, 256>}, {transform_indices = @transform_8, window_bounds = array<i64: 1, 32, 256>}]} {
    %c0 = arith.constant 0 : index
    %c0_0 = arith.constant 0 : index
    %c0_1 = arith.constant 0 : index
    %c0_2 = arith.constant 0 : index
    %0 = vector.load %arg2[%c0, %c0_0, %c0_1, %c0_2] : memref<1x1x48x260xbf16, #tpu.memory_space<vmem>>, vector<1x1x48x256xbf16>
    %1 = vector.shape_cast %0 : vector<1x1x48x256xbf16> to vector<48x256xbf16>
    %c0_3 = arith.constant 0 : index
    %c0_4 = arith.constant 0 : index
    %c0_5 = arith.constant 0 : index
    %c2 = arith.constant 2 : index
    %2 = vector.load %arg2[%c0_3, %c0_4, %c0_5, %c2] : memref<1x1x48x260xbf16, #tpu.memory_space<vmem>>, vector<1x1x48x256xbf16>
    %3 = vector.shape_cast %2 : vector<1x1x48x256xbf16> to vector<48x256xbf16>
    %c0_6 = arith.constant 0 : index
    %c0_7 = arith.constant 0 : index
    %c0_8 = arith.constant 0 : index
    %c4 = arith.constant 4 : index
    %4 = vector.load %arg2[%c0_6, %c0_7, %c0_8, %c4] : memref<1x1x48x260xbf16, #tpu.memory_space<vmem>>, vector<1x1x48x256xbf16>
    %5 = vector.shape_cast %4 : vector<1x1x48x256xbf16> to vector<48x256xbf16>
    %6 = tpu.concatenate %1, %3, %5 in 0 : vector<48x256xbf16>, vector<48x256xbf16>, vector<48x256xbf16> -> vector<144x256xbf16>
    %c0_9 = arith.constant 0 : index
    %c0_10 = arith.constant 0 : index
    %7 = vector.load %arg3[%c0_9, %c0_10] : memref<64x144xbf16, #tpu.memory_space<vmem>>, vector<64x144xbf16>
    %cst = arith.constant dense<0.000000e+00> : vector<64x256xf32>
    %8 = tpu.matmul %7, %6, %cst {dimension_numbers = #tpu.dot_dimension_numbers<[1], [0], [0], [1], [0, 0, 1, 1], [], []>} : vector<64x144xbf16>, vector<144x256xbf16>, vector<64x256xf32> -> vector<64x256xf32>
    %c0_11 = arith.constant 0 : index
    %c0_12 = arith.constant 0 : index
    %9 = vector.load %arg4[%c0_11, %c0_12] : memref<64x1xf32, #tpu.memory_space<vmem>>, vector<64x1xf32>
    %10 = vector.broadcast %9 : vector<64x1xf32> to vector<64x256xf32>
    %11 = arith.addf %8, %10 : vector<64x256xf32>
    %12 = vector.extract_strided_slice %11 {offsets = [0, 0], sizes = [32, 256], strides = [1, 1]} : vector<64x256xf32> to vector<32x256xf32>
    %13 = math.tanh %12 : vector<32x256xf32>
    %14 = vector.extract_strided_slice %11 {offsets = [32, 0], sizes = [32, 256], strides = [1, 1]} : vector<64x256xf32> to vector<32x256xf32>
    %15 = arith.negf %14 : vector<32x256xf32>
    %16 = math.exp %15 : vector<32x256xf32>
    %cst_13 = arith.constant 1.000000e+00 : f32
    %17 = vector.broadcast %cst_13 : f32 to vector<32x256xf32>
    %18 = arith.addf %17, %16 : vector<32x256xf32>
    %19 = arith.divf %17, %18 : vector<32x256xf32>
    %20 = arith.mulf %13, %19 : vector<32x256xf32>
    %21 = arith.truncf %20 : vector<32x256xf32> to vector<32x256xbf16>
    %c0_14 = arith.constant 0 : index
    %c0_15 = arith.constant 0 : index
    %22 = vector.load %arg5[%c0_14, %c0_15] : memref<32x32xbf16, #tpu.memory_space<vmem>>, vector<32x32xbf16>
    %cst_16 = arith.constant dense<0.000000e+00> : vector<32x256xf32>
    %23 = tpu.matmul %22, %21, %cst_16 {dimension_numbers = #tpu.dot_dimension_numbers<[1], [0], [0], [1], [0, 0, 1, 1], [], []>} : vector<32x32xbf16>, vector<32x256xbf16>, vector<32x256xf32> -> vector<32x256xf32>
    %c0_17 = arith.constant 0 : index
    %c0_18 = arith.constant 0 : index
    %24 = vector.load %arg7[%c0_17, %c0_18] : memref<32x1xf32, #tpu.memory_space<vmem>>, vector<32x1xf32>
    %25 = vector.broadcast %24 : vector<32x1xf32> to vector<32x256xf32>
    %26 = arith.addf %23, %25 : vector<32x256xf32>
    %c0_19 = arith.constant 0 : index
    %c0_20 = arith.constant 0 : index
    %27 = vector.load %arg6[%c0_19, %c0_20] : memref<32x32xbf16, #tpu.memory_space<vmem>>, vector<32x32xbf16>
    %cst_21 = arith.constant dense<0.000000e+00> : vector<32x256xf32>
    %28 = tpu.matmul %27, %21, %cst_21 {dimension_numbers = #tpu.dot_dimension_numbers<[1], [0], [0], [1], [0, 0, 1, 1], [], []>} : vector<32x32xbf16>, vector<32x256xbf16>, vector<32x256xf32> -> vector<32x256xf32>
    %c0_22 = arith.constant 0 : index
    %c0_23 = arith.constant 0 : index
    %29 = vector.load %arg8[%c0_22, %c0_23] : memref<32x1xf32, #tpu.memory_space<vmem>>, vector<32x1xf32>
    %30 = vector.broadcast %29 : vector<32x1xf32> to vector<32x256xf32>
    %31 = arith.addf %28, %30 : vector<32x256xf32>
    %c0_24 = arith.constant 0 : index
    %c0_25 = arith.constant 0 : index
    %c0_26 = arith.constant 0 : index
    %c2_27 = arith.constant 2 : index
    %32 = vector.load %arg2[%c0_24, %c0_25, %c0_26, %c2_27] : memref<1x1x48x260xbf16, #tpu.memory_space<vmem>>, vector<1x1x32x256xbf16>
    %33 = vector.shape_cast %32 : vector<1x1x32x256xbf16> to vector<32x256xbf16>
    %34 = arith.extf %33 : vector<32x256xbf16> to vector<32x256xf32>
    %35 = arith.addf %26, %34 : vector<32x256xf32>
    %c0_28 = arith.constant 0 : index
    %c0_29 = arith.constant 0 : index
    %c0_30 = arith.constant 0 : index
    %36 = vector.load %arg9[%c0_28, %c0_29, %c0_30] : memref<1x32x256xf32, #tpu.memory_space<vmem>>, vector<1x32x256xf32>
    %37 = vector.shape_cast %36 : vector<1x32x256xf32> to vector<32x256xf32>
    %38 = vector.shape_cast %35 : vector<32x256xf32> to vector<1x32x256xf32>
    tpu.vector_store %arg9[%c0_28, %c0_29, %c0_30], %38 {strides = array<i32>} : memref<1x32x256xf32, #tpu.memory_space<vmem>>, vector<1x32x256xf32>,
    %c0_31 = arith.constant 0 : index
    %c0_32 = arith.constant 0 : index
    %c0_33 = arith.constant 0 : index
    %39 = vector.load %arg10[%c0_31, %c0_32, %c0_33] : memref<1x32x256xf32, #tpu.memory_space<vmem>>, vector<1x32x256xf32>
    %40 = vector.shape_cast %39 : vector<1x32x256xf32> to vector<32x256xf32>
    %41 = vector.shape_cast %31 : vector<32x256xf32> to vector<1x32x256xf32>
    tpu.vector_store %arg10[%c0_31, %c0_32, %c0_33], %41 {strides = array<i32>} : memref<1x32x256xf32, #tpu.memory_space<vmem>>, vector<1x32x256xf32>,
    return
  }
  func.func @transform_0(%arg0: i32, %arg1: i32) -> (i32, i32, i32, i32) {
    %c0_i32 = arith.constant 0 : i32
    %c0_i32_0 = arith.constant 0 : i32
    %c0_i32_1 = arith.constant 0 : i32
    return %arg0, %arg1, %c0_i32, %c0_i32_0 : i32, i32, i32, i32
  }
  func.func @transform_1(%arg0: i32, %arg1: i32) -> (i32, i32) {
    %c0_i32 = arith.constant 0 : i32
    %c0_i32_0 = arith.constant 0 : i32
    %c0_i32_1 = arith.constant 0 : i32
    return %c0_i32, %c0_i32_0 : i32, i32
  }
  func.func @transform_2(%arg0: i32, %arg1: i32) -> (i32, i32) {
    %c0_i32 = arith.constant 0 : i32
    %c0_i32_0 = arith.constant 0 : i32
    %c0_i32_1 = arith.constant 0 : i32
    return %c0_i32, %c0_i32_0 : i32, i32
  }
  func.func @transform_3(%arg0: i32, %arg1: i32) -> (i32, i32) {
    %c0_i32 = arith.constant 0 : i32
    %c0_i32_0 = arith.constant 0 : i32
    %c0_i32_1 = arith.constant 0 : i32
    return %c0_i32, %c0_i32_0 : i32, i32
  }
  func.func @transform_4(%arg0: i32, %arg1: i32) -> (i32, i32) {
    %c0_i32 = arith.constant 0 : i32
    %c0_i32_0 = arith.constant 0 : i32
    %c0_i32_1 = arith.constant 0 : i32
    return %c0_i32, %c0_i32_0 : i32, i32
  }
  func.func @transform_5(%arg0: i32, %arg1: i32) -> (i32, i32) {
    %c0_i32 = arith.constant 0 : i32
    %c0_i32_0 = arith.constant 0 : i32
    %c0_i32_1 = arith.constant 0 : i32
    return %c0_i32, %c0_i32_0 : i32, i32
  }
  func.func @transform_6(%arg0: i32, %arg1: i32) -> (i32, i32) {
    %c0_i32 = arith.constant 0 : i32
    %c0_i32_0 = arith.constant 0 : i32
    %c0_i32_1 = arith.constant 0 : i32
    return %c0_i32, %c0_i32_0 : i32, i32
  }
  func.func @transform_7(%arg0: i32, %arg1: i32) -> (i32, i32, i32) {
    %c0_i32 = arith.constant 0 : i32
    %c0_i32_0 = arith.constant 0 : i32
    return %arg0, %c0_i32, %arg1 : i32, i32, i32
  }
  func.func @transform_8(%arg0: i32, %arg1: i32) -> (i32, i32, i32) {
    %c0_i32 = arith.constant 0 : i32
    %c0_i32_0 = arith.constant 0 : i32
    return %arg0, %c0_i32, %arg1 : i32, i32, i32
  }
}

</mosaic_0001>

<llo_original>
// kernel: tpu_custom_call.1
$region0: #{tpu_custom_call.1}
  #allocation0 [shape = 'u32[]', space=smem, size = 0x4, offset = 0x4, fixed_abs, tag = 'smem constant byte address 0x4 - core index']
  #allocation1 [shape = 'u32[144,128]{1,0:T(1,128)}', space=vmem, size = 0x12000, scoped, tag = 'internal scratch']
  %s0 = inlined_call_operand.hbm [shape: bf16[2,2,48,260], index: 0, kind: input, shape index: {}]
  %s1 = inlined_call_operand.vmem [shape: bf16[64,144], index: 1, kind: input, shape index: {}]
  %s2 = inlined_call_operand.vmem [shape: f32[64,1], index: 2, kind: input, shape index: {}]
  %s3 = inlined_call_operand.vmem [shape: bf16[32,32], index: 3, kind: input, shape index: {}]
  %s4 = inlined_call_operand.vmem [shape: bf16[32,32], index: 4, kind: input, shape index: {}]
  %s5 = inlined_call_operand.vmem [shape: f32[32,1], index: 5, kind: input, shape index: {}]
  %s6 = inlined_call_operand.vmem [shape: f32[32,1], index: 6, kind: input, shape index: {}]
  %s7 = inlined_call_operand.hbm [shape: f32[2,32,512], index: 7, kind: output, shape index: {0}]
  %s8 = inlined_call_operand.hbm [shape: f32[2,32,512], index: 8, kind: output, shape index: {1}]
  %9 = xla_tuple %s7, %s8
  %s10 = sld [smem:[#allocation0]]
  $region73: #{tpu_custom_call.1} parent=0
    _
  %s12 = ssub.s32 1, %s10
  %s13 = scalar_select 0, %s12, %s10
  $region1: #{tpu_custom_call.1} parent=0
    #allocation2 [shape = 'u8[73728]{0}', space=vmem, size = 0x12000, scoped, tag = 'input window, operand 0']
    #allocation3 [shape = 's32[2]{0}', space=sflag, size = 0x8, scoped, tag = 'scoped memory for tpu_custom_call.1']
    #allocation4 [shape = 's32[2]{0}', space=sflag, size = 0x8, scoped, tag = 'scoped memory for tpu_custom_call.1']
    #allocation5 [shape = 'u8[65536]{0}', space=vmem, size = 0x10000, scoped, tag = 'output window, operand 0']
    #allocation6 [shape = 'u8[65536]{0}', space=vmem, size = 0x10000, scoped, tag = 'output window, operand 1']
    #allocation7 [shape = 's32[2]{0}', space=sflag, size = 0x8, scoped, tag = 'scoped memory for tpu_custom_call.1']
    %14 = vsyncpa [#allocation3], 0
    %s15 = scalar_lea.sflag [#allocation3], 1
    %16 = vsyncpa %s15, 0
    %17 = vsyncpa [#allocation4], 0
    %s18 = scalar_lea.sflag [#allocation4], 1
    %19 = vsyncpa %s18, 0
    %20 = vsyncpa [#allocation7], 0
    %s21 = scalar_lea.sflag [#allocation7], 1
    %22 = vsyncpa %s21, 0
    loop: start=0, step=1, limit=6
    $region2: #{tpu_custom_call.1} parent=1 // loop_pre_header
      _
    $region3: #{tpu_custom_call.1} parent=1 // loop_header
      %s24 = sphi 0, %s28
      %p25 = scmp.ge.s32.totalorder %s24, 6
      %s31 = sphi 0, %s43
      %s32 = sphi 0, %s39
      %s33 = sphi 0, %s31
      %s34 = sphi 0, %s32
      %s35 = sphi 0, %s33
      %s36 = sphi 0, %s34
      %s48 = sphi 0, %s50
      %s51 = sphi 0, %s48
      %s52 = sphi 0, %s51
      %s68 = sphi 0, %s52
      %s72 = sphi 0, %s72
      %s74 = sphi 0, %s72
      %s75 = sphi 0, %s74
      %s89 = sphi 0, %s75
      %s93 = sphi 0, %s93
      %s95 = sphi 0, %s93
      %s96 = sphi 0, %s95
      %s110 = sphi 0, %s96
      %s114 = sphi 0, %s114
      %s116 = sphi 0, %s114
      %s117 = sphi 0, %s116
      %s131 = sphi 0, %s117
      %s135 = sphi 0, %s135
      %s137 = sphi 0, %s135
      %s138 = sphi 0, %s137
      %s152 = sphi 0, %s138
      %s156 = sphi 0, %s156
      %s158 = sphi 0, %s156
      %s159 = sphi 0, %s158
      %s173 = sphi 0, %s159
      %s177 = sphi 0, %s177
      %s179 = sphi 0, %s177
      %s180 = sphi 0, %s179
      %s194 = sphi 0, %s180
      %s202 = sphi 0, %s204
      %s205 = sphi 0, %s202
      %s206 = sphi 0, %s205
      %s222 = sphi 0, %s206
      %s230 = sphi 0, %s232
      %s233 = sphi 0, %s230
      %s234 = sphi 0, %s233
      %s250 = sphi 0, %s234
    $region4: #{tpu_custom_call.1} parent=1 // loop_header_branch
      %27 = sbr.rel (%p25) target = $region8
    $region5: #{tpu_custom_call.1} parent=1 // loop_body
      %s29 = ssub.s32 %s24, 1
      %s30 = ssub.s32 %s24, 2
      %s37 = sadd.s32 1, %s32
      %p38 = scmp.ge.s32.totalorder %s37, 2
      %s39 = scalar_select %p38, 0, %s37
      %s40 = sadd.s32 1, %s31
      %s41 = scalar_select %p38, %s40, %s31
      %p42 = scmp.ge.s32.totalorder %s41, 2
      %s43 = scalar_select %p42, 0, %s41
      %s44 = ssub.s32 %s31, %s43
      %s45 = ssub.s32 %s32, %s39
      %s46 = sor.u32 %s44, %s45
      %p47 = scmp.eq.s32.totalorder %s46, 0
      %s49 = sadd.s32 %s48, 1
      %s50 = scalar_select %p47, %s48, %s49
      %p53 = pneg %p47
      %p54 = scmp.eq.s32.totalorder %s24, 3
      %p55 = por %p53, %p54
      %p56 = scmp.ne.s32.totalorder %s48, %s51
      %p57 = scmp.eq.s32.totalorder %s24, 0
      %p58 = por %p56, %p57
      %p59 = scmp.ne.s32.totalorder %s48, %s51
      %p60 = scmp.eq.s32.totalorder %s29, 3
      %p61 = por %p59, %p60
      %p62 = scmp.ne.s32.totalorder %s51, %s52
      %p63 = scmp.eq.s32.totalorder %s29, 0
      %p64 = por %p62, %p63
      %p65 = scmp.ne.s32.totalorder %s51, %s52
      %p66 = scmp.eq.s32.totalorder %s30, 3
      %p67 = por %p65, %p66
      %p69 = scmp.ne.s32.totalorder %s52, %s68
      %p70 = scmp.eq.s32.totalorder %s30, 0
      %p71 = por %p69, %p70
      %s73 = sadd.s32 %s72, 1
      %p76 = scmp.eq.s32.totalorder %s24, 3
      %p77 = scmp.ne.s32.totalorder %s72, %s74
      %p78 = scmp.eq.s32.totalorder %s24, 0
      %p79 = por %p77, %p78
      %p80 = scmp.ne.s32.totalorder %s72, %s74
      %p81 = scmp.eq.s32.totalorder %s29, 3
      %p82 = por %p80, %p81
      %p83 = scmp.ne.s32.totalorder %s74, %s75
      %p84 = scmp.eq.s32.totalorder %s29, 0
      %p85 = por %p83, %p84
      %p86 = scmp.ne.s32.totalorder %s74, %s75
      %p87 = scmp.eq.s32.totalorder %s30, 3
      %p88 = por %p86, %p87
      %p90 = scmp.ne.s32.totalorder %s75, %s89
      %p91 = scmp.eq.s32.totalorder %s30, 0
      %p92 = por %p90, %p91
      %s94 = sadd.s32 %s93, 1
      %p97 = scmp.eq.s32.totalorder %s24, 3
      %p98 = scmp.ne.s32.totalorder %s93, %s95
      %p99 = scmp.eq.s32.totalorder %s24, 0
      %p100 = por %p98, %p99
      %p101 = scmp.ne.s32.totalorder %s93, %s95
      %p102 = scmp.eq.s32.totalorder %s29, 3
      %p103 = por %p101, %p102
      %p104 = scmp.ne.s32.totalorder %s95, %s96
      %p105 = scmp.eq.s32.totalorder %s29, 0
      %p106 = por %p104, %p105
      %p107 = scmp.ne.s32.totalorder %s95, %s96
      %p108 = scmp.eq.s32.totalorder %s30, 3
      %p109 = por %p107, %p108
      %p111 = scmp.ne.s32.totalorder %s96, %s110
      %p112 = scmp.eq.s32.totalorder %s30, 0
      %p113 = por %p111, %p112
      %s115 = sadd.s32 %s114, 1
      %p118 = scmp.eq.s32.totalorder %s24, 3
      %p119 = scmp.ne.s32.totalorder %s114, %s116
      %p120 = scmp.eq.s32.totalorder %s24, 0
      %p121 = por %p119, %p120
      %p122 = scmp.ne.s32.totalorder %s114, %s116
      %p123 = scmp.eq.s32.totalorder %s29, 3
      %p124 = por %p122, %p123
      %p125 = scmp.ne.s32.totalorder %s116, %s117
      %p126 = scmp.eq.s32.totalorder %s29, 0
      %p127 = por %p125, %p126
      %p128 = scmp.ne.s32.totalorder %s116, %s117
      %p129 = scmp.eq.s32.totalorder %s30, 3
      %p130 = por %p128, %p129
      %p132 = scmp.ne.s32.totalorder %s117, %s131
      %p133 = scmp.eq.s32.totalorder %s30, 0
      %p134 = por %p132, %p133
      %s136 = sadd.s32 %s135, 1
      %p139 = scmp.eq.s32.totalorder %s24, 3
      %p140 = scmp.ne.s32.totalorder %s135, %s137
      %p141 = scmp.eq.s32.totalorder %s24, 0
      %p142 = por %p140, %p141
      %p143 = scmp.ne.s32.totalorder %s135, %s137
      %p144 = scmp.eq.s32.totalorder %s29, 3
      %p145 = por %p143, %p144
      %p146 = scmp.ne.s32.totalorder %s137, %s138
      %p147 = scmp.eq.s32.totalorder %s29, 0
      %p148 = por %p146, %p147
      %p149 = scmp.ne.s32.totalorder %s137, %s138
      %p150 = scmp.eq.s32.totalorder %s30, 3
      %p151 = por %p149, %p150
      %p153 = scmp.ne.s32.totalorder %s138, %s152
      %p154 = scmp.eq.s32.totalorder %s30, 0
      %p155 = por %p153, %p154
      %s157 = sadd.s32 %s156, 1
      %p160 = scmp.eq.s32.totalorder %s24, 3
      %p161 = scmp.ne.s32.totalorder %s156, %s158
      %p162 = scmp.eq.s32.totalorder %s24, 0
      %p163 = por %p161, %p162
      %p164 = scmp.ne.s32.totalorder %s156, %s158
      %p165 = scmp.eq.s32.totalorder %s29, 3
      %p166 = por %p164, %p165
      %p167 = scmp.ne.s32.totalorder %s158, %s159
      %p168 = scmp.eq.s32.totalorder %s29, 0
      %p169 = por %p167, %p168
      %p170 = scmp.ne.s32.totalorder %s158, %s159
      %p171 = scmp.eq.s32.totalorder %s30, 3
      %p172 = por %p170, %p171
      %p174 = scmp.ne.s32.totalorder %s159, %s173
      %p175 = scmp.eq.s32.totalorder %s30, 0
      %p176 = por %p174, %p175
      %s178 = sadd.s32 %s177, 1
      %p181 = scmp.eq.s32.totalorder %s24, 3
      %p182 = scmp.ne.s32.totalorder %s177, %s179
      %p183 = scmp.eq.s32.totalorder %s24, 0
      %p184 = por %p182, %p183
      %p185 = scmp.ne.s32.totalorder %s177, %s179
      %p186 = scmp.eq.s32.totalorder %s29, 3
      %p187 = por %p185, %p186
      %p188 = scmp.ne.s32.totalorder %s179, %s180
      %p189 = scmp.eq.s32.totalorder %s29, 0
      %p190 = por %p188, %p189
      %p191 = scmp.ne.s32.totalorder %s179, %s180
      %p192 = scmp.eq.s32.totalorder %s30, 3
      %p193 = por %p191, %p192
      %p195 = scmp.ne.s32.totalorder %s180, %s194
      %p196 = scmp.eq.s32.totalorder %s30, 0
      %p197 = por %p195, %p196
      %s198 = ssub.s32 %s31, %s43
      %s199 = ssub.s32 %s32, %s39
      %s200 = sor.u32 %s198, %s199
      %p201 = scmp.eq.s32.totalorder %s200, 0
      %s203 = sadd.s32 %s202, 1
      %s204 = scalar_select %p201, %s202, %s203
      %p207 = pneg %p201
      %p208 = scmp.eq.s32.totalorder %s24, 3
      %p209 = por %p207, %p208
      %p210 = scmp.ne.s32.totalorder %s202, %s205
      %p211 = scmp.eq.s32.totalorder %s24, 0
      %p212 = por %p210, %p211
      %p213 = scmp.ne.s32.totalorder %s202, %s205
      %p214 = scmp.eq.s32.totalorder %s29, 3
      %p215 = por %p213, %p214
      %p216 = scmp.ne.s32.totalorder %s205, %s206
      %p217 = scmp.eq.s32.totalorder %s29, 0
      %p218 = por %p216, %p217
      %p219 = scmp.ne.s32.totalorder %s205, %s206
      %p220 = scmp.eq.s32.totalorder %s30, 3
      %p221 = por %p219, %p220
      %p223 = scmp.ne.s32.totalorder %s206, %s222
      %p224 = scmp.eq.s32.totalorder %s30, 0
      %p225 = por %p223, %p224
      %s226 = ssub.s32 %s31, %s43
      %s227 = ssub.s32 %s32, %s39
      %s228 = sor.u32 %s226, %s227
      %p229 = scmp.eq.s32.totalorder %s228, 0
      %s231 = sadd.s32 %s230, 1
      %s232 = scalar_select %p229, %s230, %s231
      %p235 = pneg %p229
      %p236 = scmp.eq.s32.totalorder %s24, 3
      %p237 = por %p235, %p236
      %p238 = scmp.ne.s32.totalorder %s230, %s233
      %p239 = scmp.eq.s32.totalorder %s24, 0
      %p240 = por %p238, %p239
      %p241 = scmp.ne.s32.totalorder %s230, %s233
      %p242 = scmp.eq.s32.totalorder %s29, 3
      %p243 = por %p241, %p242
      %p244 = scmp.ne.s32.totalorder %s233, %s234
      %p245 = scmp.eq.s32.totalorder %s29, 0
      %p246 = por %p244, %p245
      %p247 = scmp.ne.s32.totalorder %s233, %s234
      %p248 = scmp.eq.s32.totalorder %s30, 3
      %p249 = por %p247, %p248
      %p251 = scmp.ne.s32.totalorder %s234, %s250
      %p252 = scmp.eq.s32.totalorder %s30, 0
      %p253 = por %p251, %p252
      %p254 = scmp.le.s32.totalorder 1, %s24
      %p255 = scmp.lt.s32.totalorder %s24, 5
      %p256 = pnand %p254, %p255
      %p257 = pneg %p256
      // Predicated region
      $region9: #{tpu_custom_call.1} parent=5 // pred_check
        _
      $region10: #{tpu_custom_call.1} parent=5 // pred_check_branch
        %259 = sbr.rel (%p256) target = $region12
      $region11: #{tpu_custom_call.1} parent=5 // pred_region
        %s260 = ssub.s32 %s24, 1
        // Predicated region
        $region13: #{tpu_custom_call.1} parent=11 // pred_check
          %p261 = pneg %p85
        $region14: #{tpu_custom_call.1} parent=11 // pred_check_branch
          %263 = sbr.rel (%p261) target = $region16
        $region15: #{tpu_custom_call.1} parent=11 // pred_region
          _
        $region16: #{tpu_custom_call.1} parent=11 // pred_fallthru
          _
        // Predicated region
        $region17: #{tpu_custom_call.1} parent=11 // pred_check
          %p264 = pneg %p106
        $region18: #{tpu_custom_call.1} parent=11 // pred_check_branch
          %266 = sbr.rel (%p264) target = $region20
        $region19: #{tpu_custom_call.1} parent=11 // pred_region
          _
        $region20: #{tpu_custom_call.1} parent=11 // pred_fallthru
          _
        // Predicated region
        $region21: #{tpu_custom_call.1} parent=11 // pred_check
          %p267 = pneg %p127
        $region22: #{tpu_custom_call.1} parent=11 // pred_check_branch
          %269 = sbr.rel (%p267) target = $region24
        $region23: #{tpu_custom_call.1} parent=11 // pred_region
          _
        $region24: #{tpu_custom_call.1} parent=11 // pred_fallthru
          _
        // Predicated region
        $region25: #{tpu_custom_call.1} parent=11 // pred_check
          %p270 = pneg %p148
        $region26: #{tpu_custom_call.1} parent=11 // pred_check_branch
          %272 = sbr.rel (%p270) target = $region28
        $region27: #{tpu_custom_call.1} parent=11 // pred_region
          _
        $region28: #{tpu_custom_call.1} parent=11 // pred_fallthru
          _
        // Predicated region
        $region29: #{tpu_custom_call.1} parent=11 // pred_check
          %p273 = pneg %p169
        $region30: #{tpu_custom_call.1} parent=11 // pred_check_branch
          %275 = sbr.rel (%p273) target = $region32
        $region31: #{tpu_custom_call.1} parent=11 // pred_region
          _
        $region32: #{tpu_custom_call.1} parent=11 // pred_fallthru
          _
        // Predicated region
        $region33: #{tpu_custom_call.1} parent=11 // pred_check
          %p276 = pneg %p190
        $region34: #{tpu_custom_call.1} parent=11 // pred_check_branch
          %278 = sbr.rel (%p276) target = $region36
        $region35: #{tpu_custom_call.1} parent=11 // pred_region
          _
        $region36: #{tpu_custom_call.1} parent=11 // pred_fallthru
          _
      $region12: #{tpu_custom_call.1} parent=5 // pred_fallthru
        _
      %p279 = scmp.lt.s32.totalorder %s24, 4
      // Predicated region
      $region37: #{tpu_custom_call.1} parent=5 // pred_check
        %p280 = pneg %p279
      $region38: #{tpu_custom_call.1} parent=5 // pred_check_branch
        %282 = sbr.rel (%p280) target = $region40
      $region39: #{tpu_custom_call.1} parent=5 // pred_region
        // Predicated region
        $region41: #{tpu_custom_call.1} parent=39 // pred_check
          %p283 = pneg %p58
        $region42: #{tpu_custom_call.1} parent=39 // pred_check_branch
          %285 = sbr.rel (%p283) target = $region44
        $region43: #{tpu_custom_call.1} parent=39 // pred_region
          %s286 = sand.u32 %s48, 1
          %s287 = scalar_lea.sflag [#allocation3], %s286
          %s288 = sand.u32 %s48, 1
          %s289 = smul.addr %s288, 72
          %s290 = scalar_lea.vmem [#allocation2], %s289
          %s292 = ssub.s32 1152, 1152
          %293 = vsyncadd %s287, %s292
          %s294 = smul.addr %s32, 18
          %s295 = smul.addr %s31, 36
          %s296 = sadd.s32 %s294, %s295
          %s297 = smul.addr %s296, 64
          %s298 = scalar_lea.hbm %s0, %s297
          %s299 = sshll.u32 %s290, 4
          %s300 = int_to_ptr.vmem [resolvable:$true] %s299
          %305 = dma.hbm_to_vmem [thread:$0]  %s298, 1152, %s300, %s287, 192, 192, 12
        $region44: #{tpu_custom_call.1} parent=39 // pred_fallthru
          _
      $region40: #{tpu_custom_call.1} parent=5 // pred_fallthru
        _
      %p306 = scmp.le.s32.totalorder 1, %s24
      %p307 = scmp.lt.s32.totalorder %s24, 5
      %p308 = pnand %p306, %p307
      %p309 = pneg %p308
      // Predicated region
      $region45: #{tpu_custom_call.1} parent=5 // pred_check
        _
      $region46: #{tpu_custom_call.1} parent=5 // pred_check_branch
        %311 = sbr.rel (%p308) target = $region48
      $region47: #{tpu_custom_call.1} parent=5 // pred_region
        %s312 = ssub.s32 %s24, 1
        %s313 = sand.u32 %s51, 1
        %s314 = scalar_lea.sflag [#allocation3], %s313
        %s315 = sand.u32 %s51, 1
        %s316 = smul.addr %s315, 72
        %s317 = scalar_lea.vmem [#allocation2], %s316
        // Predicated region
        $region49: #{tpu_custom_call.1} parent=47 // pred_check
          %p318 = pneg %p64
        $region50: #{tpu_custom_call.1} parent=47 // pred_check_branch
          %320 = sbr.rel (%p318) target = $region52
        $region51: #{tpu_custom_call.1} parent=47 // pred_region
          %321 = dma.done %s314, 1152
        $region52: #{tpu_custom_call.1} parent=47 // pred_fallthru
          _
        %s322 = sand.u32 %s51, 1
        %s323 = scalar_lea.sflag [#allocation3], %s322
        %s324 = sand.u32 %s51, 1
        %s325 = smul.addr %s324, 72
        %s326 = scalar_lea.vmem [#allocation2], %s325
        %p327 = pneg %p64
        %p328 = pneg %p61
        %p329 = pneg %p85
        %p330 = pneg %p82
        %p331 = pneg %p106
        %p332 = pneg %p103
        %p333 = pneg %p127
        %p334 = pneg %p124
        %p335 = pneg %p148
        %p336 = pneg %p145
        %p337 = pneg %p169
        %p338 = pneg %p166
        %p339 = pneg %p190
        %p340 = pneg %p187
        %p341 = pneg %p218
        %p342 = pneg %p215
        %s343 = sand.u32 %s205, 1
        %s344 = scalar_lea.sflag [#allocation4], %s343
        %s345 = sand.u32 %s205, 1
        %s346 = smul.addr %s345, 64
        %s347 = scalar_lea.vmem [#allocation5], %s346
        %p348 = pneg %p246
        %p349 = pneg %p243
        %s350 = sand.u32 %s233, 1
        %s351 = scalar_lea.sflag [#allocation7], %s350
        %s352 = sand.u32 %s233, 1
        %s353 = smul.addr %s352, 64
        %s354 = scalar_lea.vmem [#allocation6], %s353
        %s355 = smul.u32 2, %s34
        %s356 = smul.u32 2, %s34
        %v358 = vld [vmem:[%s317] sm:$0xff]
        %v359 = vld [vmem:[%s317 + $0xc] sm:$0xff]
        %v360 = vld [vmem:[%s317 + $0x18] sm:$0xff]
        %v361 = vld [vmem:[%s317 + $0x24] sm:$0xff]
        %v362 = vld [vmem:[%s317 + $0x30] sm:$0xff]
        %v363 = vld [vmem:[%s317 + $0x3c] sm:$0xff]
        %v364 = vld [vmem:[%s317 + $0x8] sm:$0xf]
        %v365 = vld [vmem:[%s317 + $0x14] sm:$0xf]
        %v366 = vld [vmem:[%s317 + $0x20] sm:$0xf]
        %v367 = vld [vmem:[%s317 + $0x2c] sm:$0xf]
        %v368 = vld [vmem:[%s317 + $0x38] sm:$0xf]
        %v369 = vld [vmem:[%s317 + $0x44] sm:$0xf]
        %v376 = vunpack.c.l.b16 %v358
        %v377 = vunpack.c.h.b16 %v358
        %v378 = vunpack.c.l.b16 %v359
        %v379 = vunpack.c.h.b16 %v359
        %v380 = vunpack.c.l.b16 %v360
        %v381 = vunpack.c.h.b16 %v360
        %v382 = vunpack.c.l.b16 %v361
        %v383 = vunpack.c.h.b16 %v361
        %v384 = vunpack.c.l.b16 %v362
        %v385 = vunpack.c.h.b16 %v362
        %v386 = vunpack.c.l.b16 %v363
        %v387 = vunpack.c.h.b16 %v363
        %v388 = vpack.c.b16 %v378, %v376
        %v389 = vpack.c.b16 %v379, %v377
        %v390 = vpack.c.b16 %v382, %v380
        %v391 = vpack.c.b16 %v383, %v381
        %v392 = vpack.c.b16 %v386, %v384
        %v393 = vpack.c.b16 %v387, %v385
        %v406 = vunpack.c.l.b16 %v364
        %v407 = vunpack.c.l.b16 %v365
        %v408 = vunpack.c.l.b16 %v366
        %v409 = vunpack.c.l.b16 %v367
        %v410 = vunpack.c.l.b16 %v368
        %v411 = vunpack.c.l.b16 %v369
        %v412 = vpack.c.b16 %v407, %v406
        %v413 = vpack.c.b16 %v409, %v408
        %v414 = vpack.c.b16 %v411, %v410
        %415 = vrot.lane.b32.xlu0 %v388, 126
        %v416 = vpop.permute.xlu0 %415
        %417 = vrot.lane.b32.xlu0 %v389, 126
        %v418 = vpop.permute.xlu0 %417
        %419 = vrot.lane.b32.xlu0 %v412, 126
        %v420 = vpop.permute.xlu0 %419
        %421 = vrot.lane.b32.xlu0 %v390, 126
        %v422 = vpop.permute.xlu0 %421
        %423 = vrot.lane.b32.xlu0 %v391, 126
        %v424 = vpop.permute.xlu0 %423
        %425 = vrot.lane.b32.xlu0 %v413, 126
        %v426 = vpop.permute.xlu0 %425
        %427 = vrot.lane.b32.xlu0 %v392, 126
        %v428 = vpop.permute.xlu0 %427
        %429 = vrot.lane.b32.xlu0 %v393, 126
        %v430 = vpop.permute.xlu0 %429
        %431 = vrot.lane.b32.xlu0 %v414, 126
        %v432 = vpop.permute.xlu0 %431
        %vm433 = vcmask 1031168
        %v434 = vsel %vm433, %v416, %v418
        %v435 = vsel %vm433, %v418, %v420
        %v436 = vsel %vm433, %v422, %v424
        %v437 = vsel %vm433, %v424, %v426
        %v438 = vsel %vm433, %v428, %v430
        %v439 = vsel %vm433, %v430, %v432
        %446 = vrot.lane.b32.xlu0 %v388, 124
        %v447 = vpop.permute.xlu0 %446
        %448 = vrot.lane.b32.xlu0 %v389, 124
        %v449 = vpop.permute.xlu0 %448
        %450 = vrot.lane.b32.xlu0 %v412, 124
        %v451 = vpop.permute.xlu0 %450
        %452 = vrot.lane.b32.xlu0 %v390, 124
        %v453 = vpop.permute.xlu0 %452
        %454 = vrot.lane.b32.xlu0 %v391, 124
        %v455 = vpop.permute.xlu0 %454
        %456 = vrot.lane.b32.xlu0 %v413, 124
        %v457 = vpop.permute.xlu0 %456
        %458 = vrot.lane.b32.xlu0 %v392, 124
        %v459 = vpop.permute.xlu0 %458
        %460 = vrot.lane.b32.xlu0 %v393, 124
        %v461 = vpop.permute.xlu0 %460
        %462 = vrot.lane.b32.xlu0 %v414, 124
        %v463 = vpop.permute.xlu0 %462
        %vm464 = vcmask 1014784
        %v465 = vsel %vm464, %v447, %v449
        %v466 = vsel %vm464, %v449, %v451
        %v467 = vsel %vm464, %v453, %v455
        %v468 = vsel %vm464, %v455, %v457
        %v469 = vsel %vm464, %v459, %v461
        %v470 = vsel %vm464, %v461, %v463
        %v477 = vld [vmem:[%s1] sm:$0xff]
        %v478 = vld [vmem:[%s1 + $0x8] sm:$0xff]
        %v479 = vld [vmem:[%s1 + $0x10] sm:$0xff]
        %v480 = vld [vmem:[%s1 + $0x18] sm:$0xff]
        %v481 = vld [vmem:[%s1 + $0x20] sm:$0xff]
        %v482 = vld [vmem:[%s1 + $0x28] sm:$0xff]
        %v483 = vld [vmem:[%s1 + $0x30] sm:$0xff]
        %v484 = vld [vmem:[%s1 + $0x38] sm:$0xff]
        %v485 = vld [vmem:[%s2] sm:$0xff]
        %v486 = vld [vmem:[%s2 + $0x8] sm:$0xff]
        %v487 = vld [vmem:[%s2 + $0x10] sm:$0xff]
        %v488 = vld [vmem:[%s2 + $0x18] sm:$0xff]
        %v489 = vld [vmem:[%s2 + $0x20] sm:$0xff]
        %v490 = vld [vmem:[%s2 + $0x28] sm:$0xff]
        %v491 = vld [vmem:[%s2 + $0x30] sm:$0xff]
        %v492 = vld [vmem:[%s2 + $0x38] sm:$0xff]
        %494 = vset.pattern.permute.xlu0 0
        %495 = vperm.xlu0 %494, %v485
        %v496 = vpop.permute.xlu0 %495
        %499 = vset.pattern.permute.xlu0 0
        %500 = vperm.xlu0 %499, %v486
        %v501 = vpop.permute.xlu0 %500
        %504 = vset.pattern.permute.xlu0 0
        %505 = vperm.xlu0 %504, %v487
        %v506 = vpop.permute.xlu0 %505
        %509 = vset.pattern.permute.xlu0 0
        %510 = vperm.xlu0 %509, %v488
        %v511 = vpop.permute.xlu0 %510
        %514 = vset.pattern.permute.xlu0 0
        %515 = vperm.xlu0 %514, %v489
        %v516 = vpop.permute.xlu0 %515
        %519 = vset.pattern.permute.xlu0 0
        %520 = vperm.xlu0 %519, %v490
        %v521 = vpop.permute.xlu0 %520
        %524 = vset.pattern.permute.xlu0 0
        %525 = vperm.xlu0 %524, %v491
        %v526 = vpop.permute.xlu0 %525
        %529 = vset.pattern.permute.xlu0 0
        %530 = vperm.xlu0 %529, %v492
        %v531 = vpop.permute.xlu0 %530
        %v541 = vunpack.c.l.b16 %v477
        %v542 = vunpack.c.h.b16 %v477
        %v543 = vunpack.c.l.b16 %v478
        %v544 = vunpack.c.h.b16 %v478
        %v545 = vunpack.c.l.b16 %v479
        %v546 = vunpack.c.h.b16 %v479
        %v547 = vunpack.c.l.b16 %v480
        %v548 = vunpack.c.h.b16 %v480
        %v549 = vunpack.c.l.b16 %v481
        %v550 = vunpack.c.h.b16 %v481
        %v551 = vunpack.c.l.b16 %v482
        %v552 = vunpack.c.h.b16 %v482
        %v553 = vunpack.c.l.b16 %v483
        %v554 = vunpack.c.h.b16 %v483
        %v555 = vunpack.c.l.b16 %v484
        %v556 = vunpack.c.h.b16 %v484
        %v557 = vpack.c.b16 %v543, %v541
        %v558 = vpack.c.b16 %v544, %v542
        %v559 = vpack.c.b16 %v547, %v545
        %v560 = vpack.c.b16 %v548, %v546
        %v561 = vpack.c.b16 %v551, %v549
        %v562 = vpack.c.b16 %v552, %v550
        %v563 = vpack.c.b16 %v555, %v553
        %v564 = vpack.c.b16 %v556, %v554
        %vm569 = vcmask 130048
        %v571 = vsel %vm569, %v558, 0
        %v574 = vsel %vm569, %v560, 0
        %v577 = vsel %vm569, %v562, 0
        %v580 = vsel %vm569, %v564, 0
        %582 = vmatprep.subr.bf16.mxu0 %v468
        %583 = vmatpush1.bf16.msra.mxu0 %v467
        %584 = vmatprep.subr.bf16.mxu0 %v466
        %585 = vmatpush1.bf16.msra.mxu0 %v465
        %586 = vmatprep.subr.bf16.mxu0 %v439
        %587 = vmatpush1.bf16.msra.mxu0 %v438
        %588 = vmatprep.subr.bf16.mxu0 %v437
        %589 = vmatpush1.bf16.msra.mxu0 %v436
        %590 = vmatprep.subr.bf16.mxu0 %v435
        %591 = vmatpush1.bf16.msra.mxu0 %v434
        %592 = vmatprep.subr.bf16.mxu0 %v393
        %593 = vmatpush1.bf16.msra.mxu0 %v392
        %594 = vmatprep.subr.bf16.mxu0 %v391
        %595 = vmatpush1.bf16.msra.mxu0 %v390
        %596 = vmatprep.subr.bf16.mxu0 %v389
        %597 = vmatpush1.bf16.msra.mxu0 %v388
        %598 = vmatprep.subr.bf16.mxu0 0
        %599 = vmatpush2.bf16.msra.mxu0 0
        %600 = vmatprep.subr.bf16.mxu0 0
        %601 = vmatpush2.bf16.msra.mxu0 0
        %602 = vmatprep.subr.bf16.mxu0 0
        %603 = vmatpush2.bf16.msra.mxu0 0
        %604 = vmatprep.subr.bf16.mxu0 0
        %605 = vmatpush2.bf16.msra.mxu0 0
        %606 = vmatprep.subr.bf16.mxu0 0
        %607 = vmatpush2.bf16.msra.mxu0 0
        %608 = vmatprep.subr.bf16.mxu0 0
        %609 = vmatpush2.bf16.msra.mxu0 0
        %610 = vmatprep.subr.bf16.mxu0 0
        %611 = vmatpush2.bf16.msra.mxu0 0
        %612 = vmatprep.subr.bf16.mxu0 %v470
        %613 = vmatpush2.bf16.msra.mxu0 %v469
        %614 = vmatprep.mubr.bf16.mxu0 %v571
        %615 = vmatmul.mubr.bf16.gmra.mxu0 %v557
        %v616 = vpop.f32.mrf.mxu0
        %v617 = vadd.f32 %v496, %v616
        %v618 = vpop.f32.mrf.mxu0
        %v619 = vadd.f32 %v496, %v618
        %v620 = vpop.f32.mrf.mxu0
        %v621 = vadd.f32 %v501, %v620
        %v622 = vpop.f32.mrf.mxu0
        %v623 = vadd.f32 %v501, %v622
        %624 = vmatprep.mubr.bf16.mxu0 %v574
        %625 = vmatmul.mubr.bf16.gmra.mxu0 %v559
        %v626 = vpop.f32.mrf.mxu0
        %v627 = vadd.f32 %v506, %v626
        %v628 = vpop.f32.mrf.mxu0
        %v629 = vadd.f32 %v506, %v628
        %v630 = vpop.f32.mrf.mxu0
        %v631 = vadd.f32 %v511, %v630
        %v632 = vpop.f32.mrf.mxu0
        %v633 = vadd.f32 %v511, %v632
        %634 = vmatprep.mubr.bf16.mxu0 %v577
        %635 = vmatmul.mubr.bf16.gmra.mxu0 %v561
        %v636 = vpop.f32.mrf.mxu0
        %v637 = vadd.f32 %v516, %v636
        %v638 = vpop.f32.mrf.mxu0
        %v639 = vadd.f32 %v516, %v638
        %v640 = vpop.f32.mrf.mxu0
        %v641 = vadd.f32 %v521, %v640
        %v642 = vpop.f32.mrf.mxu0
        %v643 = vadd.f32 %v521, %v642
        %644 = vmatprep.mubr.bf16.mxu0 %v580
        %645 = vmatmul.mubr.bf16.gmra.mxu0 %v563
        %v646 = vpop.f32.mrf.mxu0
        %v647 = vadd.f32 %v526, %v646
        %v648 = vpop.f32.mrf.mxu0
        %v649 = vadd.f32 %v526, %v648
        %v650 = vpop.f32.mrf.mxu0
        %v651 = vadd.f32 %v531, %v650
        %v652 = vpop.f32.mrf.mxu0
        %v653 = vadd.f32 %v531, %v652
        %654 = vdwg.mxu0
        %v655 = vtanh.pop %v617
        %v656 = vtanh.pop %v619
        %v657 = vtanh.pop %v621
        %v658 = vtanh.pop %v623
        %v659 = vtanh.pop %v627
        %v660 = vtanh.pop %v629
        %v661 = vtanh.pop %v631
        %v662 = vtanh.pop %v633
        %v663 = vxor.u32 %v637, 2147483648
        %v664 = vxor.u32 %v639, 2147483648
        %v665 = vxor.u32 %v641, 2147483648
        %v666 = vxor.u32 %v643, 2147483648
        %v667 = vxor.u32 %v647, 2147483648
        %v668 = vxor.u32 %v649, 2147483648
        %v669 = vxor.u32 %v651, 2147483648
        %v670 = vxor.u32 %v653, 2147483648
        %v671 = vmul.f32 %v663, 1.442695
        %v672 = vpow.pop %v671
        %v673 = vmul.f32 %v664, 1.442695
        %v674 = vpow.pop %v673
        %v675 = vmul.f32 %v665, 1.442695
        %v676 = vpow.pop %v675
        %v677 = vmul.f32 %v666, 1.442695
        %v678 = vpow.pop %v677
        %v679 = vmul.f32 %v667, 1.442695
        %v680 = vpow.pop %v679
        %v681 = vmul.f32 %v668, 1.442695
        %v682 = vpow.pop %v681
        %v683 = vmul.f32 %v669, 1.442695
        %v684 = vpow.pop %v683
        %v685 = vmul.f32 %v670, 1.442695
        %v686 = vpow.pop %v685
        %v687 = vadd.f32 %v672, 1.0
        %v688 = vadd.f32 %v674, 1.0
        %v689 = vadd.f32 %v676, 1.0
        %v690 = vadd.f32 %v678, 1.0
        %v691 = vadd.f32 %v680, 1.0
        %v692 = vadd.f32 %v682, 1.0
        %v693 = vadd.f32 %v684, 1.0
        %v694 = vadd.f32 %v686, 1.0
        %v695 = vrcp.pop %v687
        %v696 = vmul.f32 1.0, %v695
        %v697 = vrcp.pop %v688
        %v698 = vmul.f32 1.0, %v697
        %v699 = vrcp.pop %v689
        %v700 = vmul.f32 1.0, %v699
        %v701 = vrcp.pop %v690
        %v702 = vmul.f32 1.0, %v701
        %v703 = vrcp.pop %v691
        %v704 = vmul.f32 1.0, %v703
        %v705 = vrcp.pop %v692
        %v706 = vmul.f32 1.0, %v705
        %v707 = vrcp.pop %v693
        %v708 = vmul.f32 1.0, %v707
        %v709 = vrcp.pop %v694
        %v710 = vmul.f32 1.0, %v709
        %v711 = vmul.f32 %v655, %v696
        %v712 = vmul.f32 %v656, %v698
        %v713 = vmul.f32 %v657, %v700
        %v714 = vmul.f32 %v658, %v702
        %v715 = vmul.f32 %v659, %v704
        %v716 = vmul.f32 %v660, %v706
        %v717 = vmul.f32 %v661, %v708
        %v718 = vmul.f32 %v662, %v710
        %v719 = vpack.c.bf16 %v713, %v711
        %v720 = vpack.c.bf16 %v714, %v712
        %v721 = vpack.c.bf16 %v717, %v715
        %v722 = vpack.c.bf16 %v718, %v716
        %v723 = vld [vmem:[%s3] sm:$0xf]
        %v724 = vld [vmem:[%s3 + $0x4] sm:$0xf]
        %v725 = vld [vmem:[%s3 + $0x8] sm:$0xf]
        %v726 = vld [vmem:[%s3 + $0xc] sm:$0xf]
        %v727 = vld [vmem:[%s5] sm:$0xff]
        %v728 = vld [vmem:[%s5 + $0x8] sm:$0xff]
        %v729 = vld [vmem:[%s5 + $0x10] sm:$0xff]
        %v730 = vld [vmem:[%s5 + $0x18] sm:$0xff]
        %732 = vset.pattern.permute.xlu0 0
        %733 = vperm.xlu0 %732, %v727
        %v734 = vpop.permute.xlu0 %733
        %737 = vset.pattern.permute.xlu0 0
        %738 = vperm.xlu0 %737, %v728
        %v739 = vpop.permute.xlu0 %738
        %742 = vset.pattern.permute.xlu0 0
        %743 = vperm.xlu0 %742, %v729
        %v744 = vpop.permute.xlu0 %743
        %747 = vset.pattern.permute.xlu0 0
        %748 = vperm.xlu0 %747, %v730
        %v749 = vpop.permute.xlu0 %748
        %v755 = vunpack.c.l.b16 %v723
        %v756 = vunpack.c.l.b16 %v724
        %v757 = vunpack.c.l.b16 %v725
        %v758 = vunpack.c.l.b16 %v726
        %v759 = vpack.c.b16 %v756, %v755
        %v760 = vpack.c.b16 %v758, %v757
        %vm761 = vcmask 261120
        %v763 = vsel %vm761, %v759, 0
        %v766 = vsel %vm761, %v760, 0
        %768 = vmatprep.subr.bf16.mxu0 0
        %769 = vmatpush1.bf16.msra.mxu0 0
        %770 = vmatprep.subr.bf16.mxu0 0
        %771 = vmatpush1.bf16.msra.mxu0 0
        %772 = vmatprep.subr.bf16.mxu0 0
        %773 = vmatpush1.bf16.msra.mxu0 0
        %774 = vmatprep.subr.bf16.mxu0 0
        %775 = vmatpush1.bf16.msra.mxu0 0
        %776 = vmatprep.subr.bf16.mxu0 0
        %777 = vmatpush1.bf16.msra.mxu0 0
        %778 = vmatprep.subr.bf16.mxu0 0
        %779 = vmatpush1.bf16.msra.mxu0 0
        %780 = vmatprep.subr.bf16.mxu0 %v722
        %781 = vmatpush1.bf16.msra.mxu0 %v721
        %782 = vmatprep.subr.bf16.mxu0 %v720
        %783 = vmatpush1.bf16.msra.mxu0 %v719
        %784 = vmatprep.subr.bf16.mxu0 0
        %785 = vmatpush2.bf16.msra.mxu0 0
        %786 = vmatprep.subr.bf16.mxu0 0
        %787 = vmatpush2.bf16.msra.mxu0 0
        %788 = vmatprep.subr.bf16.mxu0 0
        %789 = vmatpush2.bf16.msra.mxu0 0
        %790 = vmatprep.subr.bf16.mxu0 0
        %791 = vmatpush2.bf16.msra.mxu0 0
        %792 = vmatprep.subr.bf16.mxu0 0
        %793 = vmatpush2.bf16.msra.mxu0 0
        %794 = vmatprep.subr.bf16.mxu0 0
        %795 = vmatpush2.bf16.msra.mxu0 0
        %796 = vmatprep.subr.bf16.mxu0 0
        %797 = vmatpush2.bf16.msra.mxu0 0
        %798 = vmatprep.subr.bf16.mxu0 0
        %799 = vmatpush2.bf16.msra.mxu0 0
        %800 = vmatprep.mubr.bf16.mxu0 0
        %801 = vmatmul.mubr.bf16.gmra.mxu0 %v763
        %v802 = vpop.f32.mrf.mxu0
        %v803 = vadd.f32 %v734, %v802
        %v804 = vpop.f32.mrf.mxu0
        %v805 = vadd.f32 %v734, %v804
        %v806 = vpop.f32.mrf.mxu0
        %v807 = vadd.f32 %v739, %v806
        %v808 = vpop.f32.mrf.mxu0
        %v809 = vadd.f32 %v739, %v808
        %810 = vmatprep.mubr.bf16.mxu0 0
        %811 = vmatmul.mubr.bf16.gmra.mxu0 %v766
        %v812 = vpop.f32.mrf.mxu0
        %v813 = vadd.f32 %v744, %v812
        %v814 = vpop.f32.mrf.mxu0
        %v815 = vadd.f32 %v744, %v814
        %v816 = vpop.f32.mrf.mxu0
        %v817 = vadd.f32 %v749, %v816
        %v818 = vpop.f32.mrf.mxu0
        %v819 = vadd.f32 %v749, %v818
        %820 = vdwg.mxu0
        %v821 = vld [vmem:[%s4] sm:$0xf]
        %v822 = vld [vmem:[%s4 + $0x4] sm:$0xf]
        %v823 = vld [vmem:[%s4 + $0x8] sm:$0xf]
        %v824 = vld [vmem:[%s4 + $0xc] sm:$0xf]
        %v825 = vld [vmem:[%s6] sm:$0xff]
        %v826 = vld [vmem:[%s6 + $0x8] sm:$0xff]
        %v827 = vld [vmem:[%s6 + $0x10] sm:$0xff]
        %v828 = vld [vmem:[%s6 + $0x18] sm:$0xff]
        %830 = vset.pattern.permute.xlu0 0
        %831 = vperm.xlu0 %830, %v825
        %v832 = vpop.permute.xlu0 %831
        %835 = vset.pattern.permute.xlu0 0
        %836 = vperm.xlu0 %835, %v826
        %v837 = vpop.permute.xlu0 %836
        %840 = vset.pattern.permute.xlu0 0
        %841 = vperm.xlu0 %840, %v827
        %v842 = vpop.permute.xlu0 %841
        %845 = vset.pattern.permute.xlu0 0
        %846 = vperm.xlu0 %845, %v828
        %v847 = vpop.permute.xlu0 %846
        %v853 = vunpack.c.l.b16 %v821
        %v854 = vunpack.c.l.b16 %v822
        %v855 = vunpack.c.l.b16 %v823
        %v856 = vunpack.c.l.b16 %v824
        %v857 = vpack.c.b16 %v854, %v853
        %v858 = vpack.c.b16 %v856, %v855
        %v860 = vsel %vm761, %v857, 0
        %v863 = vsel %vm761, %v858, 0
        %865 = vmatprep.subr.bf16.mxu0 0
        %866 = vmatpush1.bf16.msra.mxu0 0
        %867 = vmatprep.subr.bf16.mxu0 0
        %868 = vmatpush1.bf16.msra.mxu0 0
        %869 = vmatprep.subr.bf16.mxu0 0
        %870 = vmatpush1.bf16.msra.mxu0 0
        %871 = vmatprep.subr.bf16.mxu0 0
        %872 = vmatpush1.bf16.msra.mxu0 0
        %873 = vmatprep.subr.bf16.mxu0 0
        %874 = vmatpush1.bf16.msra.mxu0 0
        %875 = vmatprep.subr.bf16.mxu0 0
        %876 = vmatpush1.bf16.msra.mxu0 0
        %877 = vmatprep.subr.bf16.mxu0 %v722
        %878 = vmatpush1.bf16.msra.mxu0 %v721
        %879 = vmatprep.subr.bf16.mxu0 %v720
        %880 = vmatpush1.bf16.msra.mxu0 %v719
        %881 = vmatprep.subr.bf16.mxu0 0
        %882 = vmatpush2.bf16.msra.mxu0 0
        %883 = vmatprep.subr.bf16.mxu0 0
        %884 = vmatpush2.bf16.msra.mxu0 0
        %885 = vmatprep.subr.bf16.mxu0 0
        %886 = vmatpush2.bf16.msra.mxu0 0
        %887 = vmatprep.subr.bf16.mxu0 0
        %888 = vmatpush2.bf16.msra.mxu0 0
        %889 = vmatprep.subr.bf16.mxu0 0
        %890 = vmatpush2.bf16.msra.mxu0 0
        %891 = vmatprep.subr.bf16.mxu0 0
        %892 = vmatpush2.bf16.msra.mxu0 0
        %893 = vmatprep.subr.bf16.mxu0 0
        %894 = vmatpush2.bf16.msra.mxu0 0
        %895 = vmatprep.subr.bf16.mxu0 0
        %896 = vmatpush2.bf16.msra.mxu0 0
        %897 = vmatprep.mubr.bf16.mxu0 0
        %898 = vmatmul.mubr.bf16.gmra.mxu0 %v860
        %v899 = vpop.f32.mrf.mxu0
        %v900 = vadd.f32 %v832, %v899
        %v901 = vpop.f32.mrf.mxu0
        %v902 = vadd.f32 %v832, %v901
        %v903 = vpop.f32.mrf.mxu0
        %v904 = vadd.f32 %v837, %v903
        %v905 = vpop.f32.mrf.mxu0
        %v906 = vadd.f32 %v837, %v905
        %907 = vmatprep.mubr.bf16.mxu0 0
        %908 = vmatmul.mubr.bf16.gmra.mxu0 %v863
        %v909 = vpop.f32.mrf.mxu0
        %v910 = vadd.f32 %v842, %v909
        %v911 = vpop.f32.mrf.mxu0
        %v912 = vadd.f32 %v842, %v911
        %v913 = vpop.f32.mrf.mxu0
        %v914 = vadd.f32 %v847, %v913
        %v915 = vpop.f32.mrf.mxu0
        %v916 = vadd.f32 %v847, %v915
        %917 = vdwg.mxu0
        %v918 = vld [vmem:[%s317] sm:$0xff]
        %v919 = vld [vmem:[%s317 + $0x8] sm:$0xf]
        %v920 = vld [vmem:[%s317 + $0xc] sm:$0xff]
        %v921 = vld [vmem:[%s317 + $0x14] sm:$0xf]
        %v922 = vld [vmem:[%s317 + $0x18] sm:$0xff]
        %v923 = vld [vmem:[%s317 + $0x20] sm:$0xf]
        %v924 = vld [vmem:[%s317 + $0x24] sm:$0xff]
        %v925 = vld [vmem:[%s317 + $0x2c] sm:$0xf]
        %v926 = vunpack.c.l.bf16 %v918
        %v927 = vunpack.c.h.bf16 %v918
        %v928 = vunpack.c.l.bf16 %v919
        %v929 = vunpack.c.l.bf16 %v920
        %v930 = vunpack.c.h.bf16 %v920
        %v931 = vunpack.c.l.bf16 %v921
        %v932 = vunpack.c.l.bf16 %v922
        %v933 = vunpack.c.h.bf16 %v922
        %v934 = vunpack.c.l.bf16 %v923
        %v935 = vunpack.c.l.bf16 %v924
        %v936 = vunpack.c.h.bf16 %v924
        %v937 = vunpack.c.l.bf16 %v925
        %950 = vrot.lane.b32.xlu0 %v926, 126
        %v951 = vpop.permute.xlu0 %950
        %952 = vrot.lane.b32.xlu0 %v927, 126
        %v953 = vpop.permute.xlu0 %952
        %954 = vrot.lane.b32.xlu0 %v928, 126
        %v955 = vpop.permute.xlu0 %954
        %956 = vrot.lane.b32.xlu0 %v929, 126
        %v957 = vpop.permute.xlu0 %956
        %958 = vrot.lane.b32.xlu0 %v930, 126
        %v959 = vpop.permute.xlu0 %958
        %960 = vrot.lane.b32.xlu0 %v931, 126
        %v961 = vpop.permute.xlu0 %960
        %962 = vrot.lane.b32.xlu0 %v932, 126
        %v963 = vpop.permute.xlu0 %962
        %964 = vrot.lane.b32.xlu0 %v933, 126
        %v965 = vpop.permute.xlu0 %964
        %966 = vrot.lane.b32.xlu0 %v934, 126
        %v967 = vpop.permute.xlu0 %966
        %968 = vrot.lane.b32.xlu0 %v935, 126
        %v969 = vpop.permute.xlu0 %968
        %970 = vrot.lane.b32.xlu0 %v936, 126
        %v971 = vpop.permute.xlu0 %970
        %972 = vrot.lane.b32.xlu0 %v937, 126
        %v973 = vpop.permute.xlu0 %972
        %vm974 = vcmask 1031168
        %v975 = vsel %vm974, %v951, %v953
        %v976 = vsel %vm974, %v953, %v955
        %v977 = vsel %vm974, %v957, %v959
        %v978 = vsel %vm974, %v959, %v961
        %v979 = vsel %vm974, %v963, %v965
        %v980 = vsel %vm974, %v965, %v967
        %v981 = vsel %vm974, %v969, %v971
        %v982 = vsel %vm974, %v971, %v973
        %v991 = vadd.f32 %v803, %v975
        %v992 = vadd.f32 %v805, %v976
        %v993 = vadd.f32 %v807, %v977
        %v994 = vadd.f32 %v809, %v978
        %v995 = vadd.f32 %v813, %v979
        %v996 = vadd.f32 %v815, %v980
        %v997 = vadd.f32 %v817, %v981
        %v998 = vadd.f32 %v819, %v982
        %999 = vst [vmem:[%s347] sm:$0xff] %v991
        %1000 = vst [vmem:[%s347 + $0x8] sm:$0xff] %v992
        %1001 = vst [vmem:[%s347 + $0x10] sm:$0xff] %v993
        %1002 = vst [vmem:[%s347 + $0x18] sm:$0xff] %v994
        %1003 = vst [vmem:[%s347 + $0x20] sm:$0xff] %v995
        %1004 = vst [vmem:[%s347 + $0x28] sm:$0xff] %v996
        %1005 = vst [vmem:[%s347 + $0x30] sm:$0xff] %v997
        %1006 = vst [vmem:[%s347 + $0x38] sm:$0xff] %v998
        %1007 = vst [vmem:[%s354] sm:$0xff] %v900
        %1008 = vst [vmem:[%s354 + $0x8] sm:$0xff] %v902
        %1009 = vst [vmem:[%s354 + $0x10] sm:$0xff] %v904
        %1010 = vst [vmem:[%s354 + $0x18] sm:$0xff] %v906
        %1011 = vst [vmem:[%s354 + $0x20] sm:$0xff] %v910
        %1012 = vst [vmem:[%s354 + $0x28] sm:$0xff] %v912
        %1013 = vst [vmem:[%s354 + $0x30] sm:$0xff] %v914
        %1014 = vst [vmem:[%s354 + $0x38] sm:$0xff] %v916
        %s1015 = sand.u32 %s205, 1
        %s1016 = scalar_lea.sflag [#allocation4], %s1015
        %s1017 = sand.u32 %s205, 1
        %s1018 = smul.addr %s1017, 64
        %s1019 = scalar_lea.vmem [#allocation5], %s1018
        %s1020 = sand.u32 %s233, 1
        %s1021 = scalar_lea.sflag [#allocation7], %s1020
        %s1022 = sand.u32 %s233, 1
        %s1023 = smul.addr %s1022, 64
        %s1024 = scalar_lea.vmem [#allocation6], %s1023
        // Predicated region
        $region53: #{tpu_custom_call.1} parent=47 // pred_check
          %p1025 = pneg %p215
        $region54: #{tpu_custom_call.1} parent=47 // pred_check_branch
          %1027 = sbr.rel (%p1025) target = $region56
        $region55: #{tpu_custom_call.1} parent=47 // pred_region
          %s1028 = smul.u32 2, %s34
          %s1030 = ssub.s32 1024, 1024
          %1031 = vsyncadd %s1016, %s1030
          %s1032 = smul.addr %s33, 16
          %s1033 = sadd.s32 %s1028, %s1032
          %s1034 = smul.addr %s1033, 128
          %s1035 = scalar_lea.hbm %s7, %s1034
          %s1036 = sshll.u32 %s1019, 4
          %s1037 = int_to_ptr.vmem [resolvable:$true] %s1036
          %1042 = dma.vmem_to_hbm [thread:$0]  %s1037, 1024, %s1035, %s1016, 256, 512, 16
        $region56: #{tpu_custom_call.1} parent=47 // pred_fallthru
          _
        // Predicated region
        $region57: #{tpu_custom_call.1} parent=47 // pred_check
          %p1043 = pneg %p243
        $region58: #{tpu_custom_call.1} parent=47 // pred_check_branch
          %1045 = sbr.rel (%p1043) target = $region60
        $region59: #{tpu_custom_call.1} parent=47 // pred_region
          %s1046 = smul.u32 2, %s34
          %s1048 = ssub.s32 1024, 1024
          %1049 = vsyncadd %s1021, %s1048
          %s1050 = smul.addr %s33, 16
          %s1051 = sadd.s32 %s1046, %s1050
          %s1052 = smul.addr %s1051, 128
          %s1053 = scalar_lea.hbm %s8, %s1052
          %s1054 = sshll.u32 %s1024, 4
          %s1055 = int_to_ptr.vmem [resolvable:$true] %s1054
          %1060 = dma.vmem_to_hbm [thread:$0]  %s1055, 1024, %s1053, %s1021, 256, 512, 16
        $region60: #{tpu_custom_call.1} parent=47 // pred_fallthru
          _
      $region48: #{tpu_custom_call.1} parent=5 // pred_fallthru
        _
      %p1061 = scmp.le.s32.totalorder 2, %s24
      // Predicated region
      $region61: #{tpu_custom_call.1} parent=5 // pred_check
        %p1062 = pneg %p1061
      $region62: #{tpu_custom_call.1} parent=5 // pred_check_branch
        %1064 = sbr.rel (%p1062) target = $region64
      $region63: #{tpu_custom_call.1} parent=5 // pred_region
        %s1065 = ssub.s32 %s24, 2
        // Predicated region
        $region65: #{tpu_custom_call.1} parent=63 // pred_check
          %p1066 = pneg %p221
        $region66: #{tpu_custom_call.1} parent=63 // pred_check_branch
          %1068 = sbr.rel (%p1066) target = $region68
        $region67: #{tpu_custom_call.1} parent=63 // pred_region
          %s1069 = sand.u32 %s206, 1
          %s1070 = scalar_lea.sflag [#allocation4], %s1069
          %s1071 = sand.u32 %s206, 1
          %s1072 = smul.addr %s1071, 64
          %s1073 = scalar_lea.vmem [#allocation5], %s1072
          %1074 = dma.done %s1070, 1024
        $region68: #{tpu_custom_call.1} parent=63 // pred_fallthru
          _
        // Predicated region
        $region69: #{tpu_custom_call.1} parent=63 // pred_check
          %p1075 = pneg %p249
        $region70: #{tpu_custom_call.1} parent=63 // pred_check_branch
          %1077 = sbr.rel (%p1075) target = $region72
        $region71: #{tpu_custom_call.1} parent=63 // pred_region
          %s1078 = sand.u32 %s234, 1
          %s1079 = scalar_lea.sflag [#allocation7], %s1078
          %s1080 = sand.u32 %s234, 1
          %s1081 = smul.addr %s1080, 64
          %s1082 = scalar_lea.vmem [#allocation6], %s1081
          %1083 = dma.done %s1079, 1024
        $region72: #{tpu_custom_call.1} parent=63 // pred_fallthru
          _
      $region64: #{tpu_custom_call.1} parent=5 // pred_fallthru
        _
    $region6: #{tpu_custom_call.1} parent=1 // loop_footer
      %s28 = sadd.s32 1, %s24
    $region7: #{tpu_custom_call.1} parent=1 // loop_footer_branch
      %23 = sbr.rel target = $region3
    $region8: #{tpu_custom_call.1} parent=1 // loop_exit
      _
    %1084 = vsyncpa [#allocation3], 1
    %s1085 = scalar_lea.sflag [#allocation3], 1
    %1086 = vsyncpa %s1085, 1
    %1087 = vsyncpa [#allocation4], 1
    %s1088 = scalar_lea.sflag [#allocation4], 1
    %1089 = vsyncpa %s1088, 1
    %1090 = vsyncpa [#allocation7], 1
    %s1091 = scalar_lea.sflag [#allocation7], 1
    %1092 = vsyncpa %s1091, 1

</llo_original>
